<compile_context>
chip_gen: v7x
topology: tpu7x:2x2x1
jax: 0.10.0
libtpu: 0.0.40
codegen_flags: <defaults>
</compile_context>

<pallas_src>
import jax
import jax.numpy as jnp
from jax.experimental import pallas as pl
from jax.experimental.pallas import tpu as pltpu


def _round_up(x, m):
    return (x + m - 1) // m * m


def time2vec_kernel(t_ref, w_ref, b_ref, o_ref):
    t = t_ref[...]                 # (1, bn)  time values along lanes
    w = w_ref[...]                 # (d, 1)   fused weights [w0, w_1..w_{d-1}]
    b = b_ref[...]                 # (d, 1)   biases
    lin = w * t + b                # (d, bn)  broadcasted affine map (VPU)
    # Row 0 is the linear term v0; rows 1..d-1 go through sin (EUP).
    o_ref[0:1, :] = lin[0:1, :]
    o_ref[1:, :] = jnp.sin(lin[1:, :])


def time2vec(t, w0, w, b, *, block_n=2048):
    """t: (N,); w0: scalar; w: (d-1,); b: (d,). Returns (N, d) float32."""
    N = t.shape[0]
    d = b.shape[0]

    # Lane-dense tiling: block lane width is a multiple of 128 (or padded-N).
    bn = min(block_n, _round_up(N, 128))
    n_pad = _round_up(N, bn)

    t_row = jnp.zeros((1, n_pad), jnp.float32).at[0, :N].set(t.astype(jnp.float32))
    w_col = jnp.concatenate([w0.reshape(1), w]).reshape(d, 1).astype(jnp.float32)
    b_col = b.reshape(d, 1).astype(jnp.float32)

    out_t = pl.pallas_call(
        time2vec_kernel,
        out_shape=jax.ShapeDtypeStruct((d, n_pad), jnp.float32),
        grid=(n_pad // bn,),
        in_specs=[
            pl.BlockSpec((1, bn), lambda i: (0, i)),   # time block (lanes)
            pl.BlockSpec((d, 1), lambda i: (0, 0)),    # weights, resident
            pl.BlockSpec((d, 1), lambda i: (0, 0)),    # biases, resident
        ],
        out_specs=pl.BlockSpec((d, bn), lambda i: (0, i)),
        compiler_params=pltpu.CompilerParams(
            dimension_semantics=("parallel",),
        ),
        cost_estimate=pl.CostEstimate(
            flops=2 * n_pad * d,
            transcendentals=n_pad * (d - 1),
            bytes_accessed=4 * (n_pad + 2 * d + n_pad * d),
        ),
    )(t_row, w_col, b_col)

    # Back to the PyTorch (N, d) layout; drop lane padding.
    return out_t.T[:N]


def reference(t, w0, w, b):
    v0 = w0 * t + b[0]
    v = jnp.sin(w[None, :] * t[:, None] + b[1:][None, :])
    return jnp.concatenate([v0[:, None], v], axis=-1)


if __name__ == "__main__":
    d = 12
    N = 16

    key = jax.random.PRNGKey(0)
    k_w0, k_w, k_b, k_t = jax.random.split(key, 4)
    # Deterministic parameter init mirroring torch.randn shapes in __init__.
    w0 = jax.random.normal(k_w0, (), dtype=jnp.float32)
    w = jax.random.normal(k_w, (d - 1,), dtype=jnp.float32)
    b = jax.random.normal(k_b, (d,), dtype=jnp.float32)

    # Small-shape check (single block, padded to 128 lanes).
    t = jax.random.normal(k_t, (N,), dtype=jnp.float32)
    out = jax.block_until_ready(time2vec(t, w0, w, b))
    ref = reference(t, w0, w, b)
    assert out.shape == (N, d)
    assert jnp.allclose(out, ref, atol=1e-5, rtol=1e-5)

    # Multi-block check (exercises the grid, uneven N with padding).
    N2 = 4099
    t2 = jax.random.normal(jax.random.PRNGKey(1), (N2,), dtype=jnp.float32)
    out2 = jax.block_until_ready(time2vec(t2, w0, w, b))
    ref2 = reference(t2, w0, w, b)
    assert out2.shape == (N2, d)
    assert jnp.allclose(out2, ref2, atol=1e-5, rtol=1e-5)

    print("KERNEL_OK")
</pallas_src>

<mosaic_0001>
module attributes {stable_mosaic.version = 11 : i64} {
  func.func @time2vec_kernel(%arg0: i32, %arg1: memref<1x128xf32, #tpu.memory_space<vmem>>, %arg2: memref<12x1xf32, #tpu.memory_space<vmem>>, %arg3: memref<12x1xf32, #tpu.memory_space<vmem>>, %arg4: memref<12x128xf32, #tpu.memory_space<vmem>>) attributes {dimension_semantics = [#tpu.dimension_semantics<parallel>], iteration_bounds = array<i64: 1>, scalar_prefetch = 0 : i64, scratch_operands = 0 : i64, tpu.core_type = #tpu.core_type<tc>, window_params = [{transform_indices = @transform_0, window_bounds = array<i64: 1, 128>}, {pipeline_mode = #tpu.pipeline_mode<synchronous>, transform_indices = @transform_1, window_bounds = array<i64: 12, 1>}, {pipeline_mode = #tpu.pipeline_mode<synchronous>, transform_indices = @transform_2, window_bounds = array<i64: 12, 1>}, {transform_indices = @transform_3, window_bounds = array<i64: 12, 128>}]} {
    %c0 = arith.constant 0 : index
    %c0_0 = arith.constant 0 : index
    %0 = vector.load %arg1[%c0, %c0_0] : memref<1x128xf32, #tpu.memory_space<vmem>>, vector<1x128xf32>
    %c0_1 = arith.constant 0 : index
    %c0_2 = arith.constant 0 : index
    %1 = vector.load %arg2[%c0_1, %c0_2] : memref<12x1xf32, #tpu.memory_space<vmem>>, vector<12x1xf32>
    %c0_3 = arith.constant 0 : index
    %c0_4 = arith.constant 0 : index
    %2 = vector.load %arg3[%c0_3, %c0_4] : memref<12x1xf32, #tpu.memory_space<vmem>>, vector<12x1xf32>
    %3 = vector.broadcast %1 : vector<12x1xf32> to vector<12x128xf32>
    %4 = vector.broadcast %0 : vector<1x128xf32> to vector<12x128xf32>
    %5 = arith.mulf %3, %4 : vector<12x128xf32>
    %6 = vector.broadcast %2 : vector<12x1xf32> to vector<12x128xf32>
    %7 = arith.addf %5, %6 : vector<12x128xf32>
    %8 = vector.extract_strided_slice %7 {offsets = [0, 0], sizes = [1, 128], strides = [1, 1]} : vector<12x128xf32> to vector<1x128xf32>
    %c0_5 = arith.constant 0 : index
    %c0_6 = arith.constant 0 : index
    %9 = vector.load %arg4[%c0_5, %c0_6] : memref<12x128xf32, #tpu.memory_space<vmem>>, vector<1x128xf32>
    tpu.vector_store %arg4[%c0_5, %c0_6], %8 {strides = array<i32>} : memref<12x128xf32, #tpu.memory_space<vmem>>, vector<1x128xf32>,
    %10 = vector.extract_strided_slice %7 {offsets = [1, 0], sizes = [11, 128], strides = [1, 1]} : vector<12x128xf32> to vector<11x128xf32>
    %11 = math.sin %10 : vector<11x128xf32>
    %c1 = arith.constant 1 : index
    %c0_7 = arith.constant 0 : index
    %12 = vector.load %arg4[%c1, %c0_7] : memref<12x128xf32, #tpu.memory_space<vmem>>, vector<11x128xf32>
    tpu.vector_store %arg4[%c1, %c0_7], %11 {strides = array<i32>} : memref<12x128xf32, #tpu.memory_space<vmem>>, vector<11x128xf32>,
    return
  }
  func.func @transform_0(%arg0: i32) -> (i32, i32) {
    %c0_i32 = arith.constant 0 : i32
    %c0_i32_0 = arith.constant 0 : i32
    return %c0_i32, %arg0 : i32, i32
  }
  func.func @transform_1(%arg0: i32) -> (i32, i32) {
    %c0_i32 = arith.constant 0 : i32
    %c0_i32_0 = arith.constant 0 : i32
    %c0_i32_1 = arith.constant 0 : i32
    return %c0_i32, %c0_i32_0 : i32, i32
  }
  func.func @transform_2(%arg0: i32) -> (i32, i32) {
    %c0_i32 = arith.constant 0 : i32
    %c0_i32_0 = arith.constant 0 : i32
    %c0_i32_1 = arith.constant 0 : i32
    return %c0_i32, %c0_i32_0 : i32, i32
  }
  func.func @transform_3(%arg0: i32) -> (i32, i32) {
    %c0_i32 = arith.constant 0 : i32
    %c0_i32_0 = arith.constant 0 : i32
    return %c0_i32, %arg0 : i32, i32
  }
}

</mosaic_0001>

<llo_original>
// kernel: tpu_custom_call.1
$region0: #{tpu_custom_call.1}
  #allocation0 [shape = 'u32[]', space=smem, size = 0x4, offset = 0x4, fixed_abs, tag = 'smem constant byte address 0x4 - core index']
  #allocation1 [shape = 'u32[144,128]{1,0:T(1,128)}', space=vmem, size = 0x12000, scoped, tag = 'internal scratch']
  %s0 = inlined_call_operand.vmem [shape: f32[1,128], index: 0, kind: input, shape index: {}]
  %s1 = inlined_call_operand.vmem [shape: f32[12,1], index: 1, kind: input, shape index: {}]
  %s2 = inlined_call_operand.vmem [shape: f32[12,1], index: 2, kind: input, shape index: {}]
  %s3 = inlined_call_operand.hbm [shape: f32[12,128], index: 3, kind: output, shape index: {}]
  %s4 = sld [smem:[#allocation0]]
  $region22: #{tpu_custom_call.1} parent=0
    _
  %s6 = ssub.s32 1, %s4
  %s7 = scalar_select 0, %s6, %s4
  $region1: #{tpu_custom_call.1} parent=0
    #allocation2 [shape = 'u8[8192]{0}', space=vmem, size = 0x2000, scoped, tag = 'output window, operand 0, single buffered']
    #allocation3 [shape = 's32[1]{0}', space=sflag, size = 0x4, scoped, tag = 'scoped memory for tpu_custom_call.1']
    %8 = vsyncpa [#allocation3], 0
    // Predicated region
    $region2: #{tpu_custom_call.1} parent=1 // pred_check
      _
    $region3: #{tpu_custom_call.1} parent=1 // pred_check_branch
      %10 = sbr.rel (0) target = $region5
    $region4: #{tpu_custom_call.1} parent=1 // pred_region
      _
    $region5: #{tpu_custom_call.1} parent=1 // pred_fallthru
      _
    // Predicated region
    $region6: #{tpu_custom_call.1} parent=1 // pred_check
      _
    $region7: #{tpu_custom_call.1} parent=1 // pred_check_branch
      %12 = sbr.rel (0) target = $region9
    $region8: #{tpu_custom_call.1} parent=1 // pred_region
      _
    $region9: #{tpu_custom_call.1} parent=1 // pred_fallthru
      _
    // Predicated region
    $region10: #{tpu_custom_call.1} parent=1 // pred_check
      _
    $region11: #{tpu_custom_call.1} parent=1 // pred_check_branch
      %14 = sbr.rel (0) target = $region13
    $region12: #{tpu_custom_call.1} parent=1 // pred_region
      _
    $region13: #{tpu_custom_call.1} parent=1 // pred_fallthru
      _
    %v15 = vld [vmem:[%s0] sm:$0x1]
    %v16 = vld [vmem:[%s1] sm:$0xff]
    %v17 = vld [vmem:[%s1 + $0x8] sm:$0xf]
    %v18 = vld [vmem:[%s2] sm:$0xff]
    %v19 = vld [vmem:[%s2 + $0x8] sm:$0xf]
    %21 = vset.pattern.permute.xlu0 0
    %22 = vperm.xlu0 %21, %v16
    %v23 = vpop.permute.xlu0 %22
    %26 = vset.pattern.permute.xlu0 0
    %27 = vperm.xlu0 %26, %v17
    %v28 = vpop.permute.xlu0 %27
    %v31 = vlaneseq
    %v32 = vshrl.u32 %v31, 7
    %v33 = vsub.s32 0, %v32
    %v34 = vrot.slane %v15, %v33
    %v36 = vmul.f32 %v23, %v34
    %v37 = vmul.f32 %v28, %v34
    %39 = vset.pattern.permute.xlu0 0
    %40 = vperm.xlu0 %39, %v18
    %v41 = vpop.permute.xlu0 %40
    %44 = vset.pattern.permute.xlu0 0
    %45 = vperm.xlu0 %44, %v19
    %v46 = vpop.permute.xlu0 %45
    %v48 = vadd.f32 %v36, %v41
    %v49 = vadd.f32 %v37, %v46
    %50 = vst [vmem:[#allocation2] sm:$0x1] %v48
    %v51 = vand.u32 2147483647, %v48
    %vm52 = vcmp.le.f32.partialorder %v51, 0.7853982
    %vm53 = vcmp.lt.s32.totalorder %v48, 0
    %v54 = vand.u32 %v48, 2139095040
    %v55 = vshrl.u32 %v54, 23
    %v56 = vsub.s32 %v55, 127
    %v57 = vand.u32 2147483647, %v48
    %v58 = vand.u32 %v57, 8388607
    %v59 = vor.u32 %v58, 8388608
    %v60 = vsub.s32 0, %v59
    %v61 = vadd.s32 %v56, 1
    %vm62 = vcmp.gt.s32.totalorder %v61, 0
    %v63 = vsel %vm62, %v61, 0
    %v64 = vshrl.u32 %v63, 5
    %v65 = vand.u32 %v63, 31
    %v66 = vsub.s32 32, %v65
    %v67 = vshrl.u32 683565275, %v66
    %v68 = vshll.u32 683565275, %v65
    %v69 = vshrl.u32 2475754826, %v66
    %v70 = vor.u32 %v68, %v69
    %v71 = vshll.u32 2475754826, %v65
    %v72 = vshrl.u32 2131351028, %v66
    %v73 = vor.u32 %v71, %v72
    %v74 = vshll.u32 2131351028, %v65
    %v75 = vshrl.u32 2102212464, %v66
    %v76 = vor.u32 %v74, %v75
    %v77 = vshll.u32 2102212464, %v65
    %v78 = vshrl.u32 920167782, %v66
    %v79 = vor.u32 %v77, %v78
    %v80 = vshll.u32 920167782, %v65
    %v81 = vshrl.u32 1326507024, %v66
    %v82 = vor.u32 %v80, %v81
    %vm83 = vcmp.lt.s32.totalorder %v64, 1
    %vm84 = vcmp.lt.s32.totalorder %v64, 2
    %vm85 = vcmp.lt.s32.totalorder %v64, 3
    %vm86 = vcmp.lt.s32.totalorder %v64, 4
    %v87 = vsel %vm83, %v67, %v70
    %v88 = vsel %vm86, %v76, 2102212464
    %v89 = vsel %vm85, %v73, %v88
    %v90 = vsel %vm84, %v87, %v89
    %v91 = vsel %vm83, %v70, %v73
    %v92 = vsel %vm86, %v79, 920167782
    %v93 = vsel %vm85, %v76, %v92
    %v94 = vsel %vm84, %v91, %v93
    %v95 = vsel %vm83, %v73, %v76
    %v96 = vsel %vm86, %v82, 1326507024
    %v97 = vsel %vm85, %v79, %v96
    %v98 = vsel %vm84, %v95, %v97
    %v99 = vshll.u32 %v59, 8
    %v100 = vmul.u32.u64.compose %v99, %v98
    %v101 = vextract.low.u32 %v100
    %v102 = vextract.high.u32 %v100
    %v103 = vmul.u32.u64.compose %v99, %v94
    %v104 = vextract.low.u32 %v103
    %v105 = vextract.high.u32 %v103
    %v106 = vmul.u32 %v99, %v90
    %v107 = vadd.s32 %v102, %v104
    %vm108 = vc.u32 %v102, %v104
    %v109 = vadd.s32 %v105, 1
    %v110 = vsel %vm108, %v109, %v105
    %v111 = vadd.s32 %v106, %v110
    %v112 = vadd.s32 %v111, 536870912
    %v113 = vshrl.u32 %v112, 30
    %v114 = vshll.u32 %v113, 30
    %v115 = vsub.s32 %v111, %v114
    %vm116 = vcmp.lt.s32.totalorder %v115, 0
    %v117 = vsub.s32 0, %v115
    %v118 = vsel %vm116, %v117, %v115
    %v119 = vclz %v118
    %v120 = vsub.s32 %v119, 2
    %vm121 = vcmp.gt.s32.totalorder 0, %v120
    %v122 = vsel %vm121, 0, %v120
    %v123 = vsub.s32 32, %v122
    %v124 = vshll.u32 %v115, %v122
    %v125 = vshrl.u32 %v107, %v123
    %v126 = vor.u32 %v124, %v125
    %v127 = vsub.s32 4294967266, %v122
    %v128 = vadd.s32 %v127, 127
    %v129 = vshll.u32 %v128, 23
    %v130 = vor.u32 4788187, %v129
    %v131 = vand.u32 2147483647, %v130
    %v133 = vcvt.s32.f32 %v126
    %v134 = vmul.f32 %v133, %v131
    %v135 = vxor.u32 %v134, 2147483648
    %v136 = vsel %vm53, %v135, %v134
    %v137 = vsub.s32 4, %v113
    %v138 = vsel %vm53, %v137, %v113
    %v139 = vsel %vm52, %v48, %v136
    %v140 = vsel %vm52, 0, %v138
    %v141 = vcosq.f32.pop %v139
    %v142 = vsinq.f32.pop %v139
    %vm143 = vweird.f32 %v48
    %v144 = vadd.s32 %v140, 3
    %v145 = vand.u32 %v144, 3
    %vm146 = vcmp.lt.s32.totalorder %v145, 2
    %vm147 = vcmp.eq.s32.totalorder %v145, 0
    %v148 = vxor.u32 %v142, 2147483648
    %v149 = vsel %vm147, %v141, %v148
    %vm150 = vcmp.eq.s32.totalorder %v145, 2
    %v151 = vxor.u32 %v141, 2147483648
    %v152 = vsel %vm150, %v151, %v142
    %v153 = vsel %vm146, %v149, %v152
    %v154 = vsel %vm143, nan, %v153
    %v155 = vand.u32 2147483647, %v49
    %vm156 = vcmp.le.f32.partialorder %v155, 0.7853982
    %vm157 = vcmp.lt.s32.totalorder %v49, 0
    %v158 = vand.u32 %v49, 2139095040
    %v159 = vshrl.u32 %v158, 23
    %v160 = vsub.s32 %v159, 127
    %v161 = vand.u32 2147483647, %v49
    %v162 = vand.u32 %v161, 8388607
    %v163 = vor.u32 %v162, 8388608
    %v164 = vsub.s32 0, %v163
    %v165 = vadd.s32 %v160, 1
    %vm166 = vcmp.gt.s32.totalorder %v165, 0
    %v167 = vsel %vm166, %v165, 0
    %v168 = vshrl.u32 %v167, 5
    %v169 = vand.u32 %v167, 31
    %v170 = vsub.s32 32, %v169
    %v171 = vshrl.u32 683565275, %v170
    %v172 = vshll.u32 683565275, %v169
    %v173 = vshrl.u32 2475754826, %v170
    %v174 = vor.u32 %v172, %v173
    %v175 = vshll.u32 2475754826, %v169
    %v176 = vshrl.u32 2131351028, %v170
    %v177 = vor.u32 %v175, %v176
    %v178 = vshll.u32 2131351028, %v169
    %v179 = vshrl.u32 2102212464, %v170
    %v180 = vor.u32 %v178, %v179
    %v181 = vshll.u32 2102212464, %v169
    %v182 = vshrl.u32 920167782, %v170
    %v183 = vor.u32 %v181, %v182
    %v184 = vshll.u32 920167782, %v169
    %v185 = vshrl.u32 1326507024, %v170
    %v186 = vor.u32 %v184, %v185
    %vm187 = vcmp.lt.s32.totalorder %v168, 1
    %vm188 = vcmp.lt.s32.totalorder %v168, 2
    %vm189 = vcmp.lt.s32.totalorder %v168, 3
    %vm190 = vcmp.lt.s32.totalorder %v168, 4
    %v191 = vsel %vm187, %v171, %v174
    %v192 = vsel %vm190, %v180, 2102212464
    %v193 = vsel %vm189, %v177, %v192
    %v194 = vsel %vm188, %v191, %v193
    %v195 = vsel %vm187, %v174, %v177
    %v196 = vsel %vm190, %v183, 920167782
    %v197 = vsel %vm189, %v180, %v196
    %v198 = vsel %vm188, %v195, %v197
    %v199 = vsel %vm187, %v177, %v180
    %v200 = vsel %vm190, %v186, 1326507024
    %v201 = vsel %vm189, %v183, %v200
    %v202 = vsel %vm188, %v199, %v201
    %v203 = vshll.u32 %v163, 8
    %v204 = vmul.u32.u64.compose %v203, %v202
    %v205 = vextract.low.u32 %v204
    %v206 = vextract.high.u32 %v204
    %v207 = vmul.u32.u64.compose %v203, %v198
    %v208 = vextract.low.u32 %v207
    %v209 = vextract.high.u32 %v207
    %v210 = vmul.u32 %v203, %v194
    %v211 = vadd.s32 %v206, %v208
    %vm212 = vc.u32 %v206, %v208
    %v213 = vadd.s32 %v209, 1
    %v214 = vsel %vm212, %v213, %v209
    %v215 = vadd.s32 %v210, %v214
    %v216 = vadd.s32 %v215, 536870912
    %v217 = vshrl.u32 %v216, 30
    %v218 = vshll.u32 %v217, 30
    %v219 = vsub.s32 %v215, %v218
    %vm220 = vcmp.lt.s32.totalorder %v219, 0
    %v221 = vsub.s32 0, %v219
    %v222 = vsel %vm220, %v221, %v219
    %v223 = vclz %v222
    %v224 = vsub.s32 %v223, 2
    %vm225 = vcmp.gt.s32.totalorder 0, %v224
    %v226 = vsel %vm225, 0, %v224
    %v227 = vsub.s32 32, %v226
    %v228 = vshll.u32 %v219, %v226
    %v229 = vshrl.u32 %v211, %v227
    %v230 = vor.u32 %v228, %v229
    %v231 = vsub.s32 4294967266, %v226
    %v232 = vadd.s32 %v231, 127
    %v233 = vshll.u32 %v232, 23
    %v234 = vor.u32 4788187, %v233
    %v235 = vand.u32 2147483647, %v234
    %v237 = vcvt.s32.f32 %v230
    %v238 = vmul.f32 %v237, %v235
    %v239 = vxor.u32 %v238, 2147483648
    %v240 = vsel %vm157, %v239, %v238
    %v241 = vsub.s32 4, %v217
    %v242 = vsel %vm157, %v241, %v217
    %v243 = vsel %vm156, %v49, %v240
    %v244 = vsel %vm156, 0, %v242
    %v245 = vcosq.f32.pop %v243
    %v246 = vsinq.f32.pop %v243
    %vm247 = vweird.f32 %v49
    %v248 = vadd.s32 %v244, 3
    %v249 = vand.u32 %v248, 3
    %vm250 = vcmp.lt.s32.totalorder %v249, 2
    %vm251 = vcmp.eq.s32.totalorder %v249, 0
    %v252 = vxor.u32 %v246, 2147483648
    %v253 = vsel %vm251, %v245, %v252
    %vm254 = vcmp.eq.s32.totalorder %v249, 2
    %v255 = vxor.u32 %v245, 2147483648
    %v256 = vsel %vm254, %v255, %v246
    %v257 = vsel %vm250, %v253, %v256
    %v258 = vsel %vm247, nan, %v257
    %259 = vst [vmem:[#allocation2] sm:$0xfe] %v154
    %260 = vst [vmem:[#allocation2 + $0x8] sm:$0xf] %v258
    // Predicated region
    $region14: #{tpu_custom_call.1} parent=1 // pred_check
      _
    $region15: #{tpu_custom_call.1} parent=1 // pred_check_branch
      %262 = sbr.rel (0) target = $region17
    $region16: #{tpu_custom_call.1} parent=1 // pred_region
      %s264 = ssub.s32 256, 256
      %265 = vsyncadd [#allocation3], %s264
      %s266 = sshll.u32 [#allocation2], 4
      %s267 = int_to_ptr.vmem [resolvable:$true] %s266
      %272 = dma.vmem_to_hbm [thread:$0]  %s267, 256, %s3, [#allocation3], 128, 128, 8
    $region17: #{tpu_custom_call.1} parent=1 // pred_fallthru
      _
    // Predicated region
    $region18: #{tpu_custom_call.1} parent=1 // pred_check
      _
    $region19: #{tpu_custom_call.1} parent=1 // pred_check_branch
      %274 = sbr.rel (0) target = $region21
    $region20: #{tpu_custom_call.1} parent=1 // pred_region
      %275 = dma.done [#allocation3], 256
    $region21: #{tpu_custom_call.1} parent=1 // pred_fallthru
      _
    %276 = vsyncpa [#allocation3], 1

</llo_original>
